<compile_context>
chip_gen: v5e
topology: v5e:2x2
jax: 0.10.0
libtpu: 0.0.40
codegen_flags: <defaults>
</compile_context>

<pallas_src>
import jax
import jax.numpy as jnp
from jax.experimental import pallas as pl
from jax.experimental.pallas import tpu as pltpu


def _tpu_vmem_limit_bytes():
    """Generation-aware scoped-VMEM limit: ~half of physical VMEM, capped at 48 MiB.
    (v5e/v6e: 128 MiB physical -> 48 MiB; v7x: 64 MiB physical -> 32 MiB.)"""
    cap = None
    try:
        cap = getattr(pltpu.get_tpu_info(), "vmem_capacity_bytes", None)
    except Exception:
        cap = None
    if not cap:
        cap = 64 * 1024 * 1024          # conservative: assume v7x-sized VMEM
    return int(min(cap // 2, 48 * 1024 * 1024))


_VMEM_LIMIT = _tpu_vmem_limit_bytes()
# per-input-block byte target: x2 double-buffering + in-kernel temps stay well inside the limit
_BLOCK_BYTE_BUDGET = max(1 << 20, min(4 << 20, _VMEM_LIMIT // 8))


def _largest_aligned_divisor(total, align, cap):
    """Largest multiple of `align` that divides `total` and is <= cap; falls back to `total`."""
    best = None
    cap = max(align, min(total, cap))
    k = align
    while k <= cap:
        if total % k == 0:
            best = k
        k += align
    return best if best is not None else total


def _pick_row_tile(h, w, cin, bytes_per_elem, budget, prefer_multi):
    """Largest TH with H % TH == 0, (TH*W) % 128 == 0 and a (TH+2)-row tile within budget.
    Prefers TH <= H/2 (>=2 grid steps for megacore) when requested; falls back to full H."""
    cap_rows = max(1, budget // max(1, (w + 2) * cin * bytes_per_elem))
    cands = [t for t in range(1, h + 1)
             if h % t == 0 and (t * w) % 128 == 0 and t <= cap_rows]
    if prefer_multi:
        multi = [t for t in cands if t <= h // 2]
        if multi:
            return max(multi)
    if cands:
        return max(cands)
    # TODO(synk): pad W (or relax the lane-dense output store) for widths where no 128-aligned
    # row tile exists, instead of falling back to a single full-H tile.
    return h


def _pick_leading_tile(total, bytes_per_item, budget, prefer_multi):
    """Largest divisor of `total` within the byte budget; prefers >=2 grid steps."""
    cap = max(1, budget // max(1, bytes_per_item))
    cands = [t for t in range(1, total + 1) if total % t == 0 and t <= cap]
    if prefer_multi and total >= 2:
        multi = [t for t in cands if t <= total // 2]
        if multi:
            return max(multi)
    return max(cands) if cands else 1


# ----------------------------- Pallas kernels -----------------------------

def _normalize_kernel(scale_ref, shift_ref, x_ref, o_ref):
    # scale/shift: (C, 1) VMEM, broadcast over the HW tile; x/o: (1, C, TILE_HW) VMEM.
    o_ref[0] = x_ref[0] * scale_ref[...] + shift_ref[...]


def _conv3x3_kernel(body_ref, halo0_ref, halo1_ref, w_ref, b_ref, o_ref):
    # body_ref : (1, TH, W+2, Cin)  padded NHWC rows [t*TH, t*TH+TH)
    # halo0/1  : (1, 1, W+2, Cin)   the two extra padded rows below the body (overlap w/ next tile)
    # w_ref    : (9, Cin, Cout)     3x3 kernel, tap-major
    # b_ref    : (1, Cout)
    # o_ref    : (1, Cout, TH*W)    NCHW-flattened, lane-dense store
    body = body_ref[0]                                             # (TH, W+2, Cin)
    x = jnp.concatenate([body, halo0_ref[0], halo1_ref[0]], axis=0)  # (TH+2, W+2, Cin) in VMEM
    th, wp, cin = body.shape[0], body.shape[1], body.shape[2]
    w = wp - 2
    cout = o_ref.shape[1]

    # 9 accumulating matmuls -- no (TH*W, 9*Cin) im2col buffer; only one tap is live at a time.
    acc = jnp.zeros((th * w, cout), jnp.float32)
    for kh in range(3):
        for kw in range(3):
            tap = x[kh:kh + th, kw:kw + w, :].reshape(th * w, cin)   # (TH*W, Cin), VMEM-local
            acc = acc + jnp.dot(tap, w_ref[kh * 3 + kw],
                                preferred_element_type=jnp.float32)
    acc = acc + b_ref[...]                                           # (TH*W, Cout)
    # Single small (TH*W, Cout=32) transpose keeps the store lane-dense (Cout, TH*W).
    o_ref[0] = acc.T.astype(o_ref.dtype)
    # TODO(synk): optional fusion of the first (largest) pool level into this epilogue would
    # save one full HBM read of the gc feature for the p3->p4 pool.


# ----------------------------- wrappers -----------------------------------

def normalize_images(images_nchw, pixel_mean, pixel_std):
    """self.normalizer: (x - mean) / std  ==  x * (1/std) + (-mean/std), per channel."""
    n, c, h, w = images_nchw.shape
    hw = h * w
    x = images_nchw.reshape(n, c, hw).astype(jnp.float32)
    scale = (1.0 / pixel_std.reshape(c, 1)).astype(jnp.float32)
    shift = (-pixel_mean.reshape(c, 1)).astype(jnp.float32) * scale
    tile = _largest_aligned_divisor(hw, 128, _BLOCK_BYTE_BUDGET // (c * 4))
    out = pl.pallas_call(
        _normalize_kernel,
        out_shape=jax.ShapeDtypeStruct((n, c, hw), jnp.float32),
        grid=(n, hw // tile),
        in_specs=[
            pl.BlockSpec((c, 1), lambda i, t: (0, 0)),
            pl.BlockSpec((c, 1), lambda i, t: (0, 0)),
            pl.BlockSpec((1, c, tile), lambda i, t: (i, 0, t)),
        ],
        out_specs=pl.BlockSpec((1, c, tile), lambda i, t: (i, 0, t)),
        compiler_params=pltpu.CompilerParams(
            dimension_semantics=("parallel", "parallel"),
            vmem_limit_bytes=_VMEM_LIMIT),
    )(scale, shift, x)
    return out.reshape(n, c, h, w)


def conv3x3_same(x_nchw, weight, bias, *, compute_dtype=jnp.float32):
    """self.gc_layer: nn.Conv2d(Cin, Cout, kernel_size=3, stride=1, padding=1).
    x: (N,Cin,H,W); weight: (Cout,Cin,3,3) OIHW; bias: (Cout,). Returns NCHW (f32)."""
    n, cin, h, w = x_nchw.shape
    cout = weight.shape[0]
    # One NCHW->NHWC transpose + zero-pad in XLA; overlapping (TH+2)-row windows are then DMA'd
    # straight out of this array (body block + two 1-row halo blocks of the SAME operand), so
    # there is no halo-duplicated HBM materialization.
    x_nhwc = jnp.transpose(x_nchw, (0, 2, 3, 1)).astype(compute_dtype)
    xp = jnp.pad(x_nhwc, ((0, 0), (1, 1), (1, 1), (0, 0)))          # (N, H+2, W+2, Cin)

    bpe = jnp.dtype(compute_dtype).itemsize
    th = _pick_row_tile(h, w, cin, bpe, _BLOCK_BYTE_BUDGET, prefer_multi=(n < 2))
    nt = h // th

    w_flat = jnp.transpose(weight, (2, 3, 1, 0)).reshape(9, cin, cout).astype(compute_dtype)
    b2 = bias.reshape(1, cout).astype(jnp.float32)

    out = pl.pallas_call(
        _conv3x3_kernel,
        out_shape=jax.ShapeDtypeStruct((n, cout, h * w), jnp.float32),
        grid=(n, nt),
        in_specs=[
            # body rows [t*TH, t*TH+TH) of the padded array
            pl.BlockSpec((1, th, w + 2, cin), lambda i, t: (i, t, 0, 0)),
            # the two halo rows below the body (overlap with the next tile's body)
            pl.BlockSpec((1, 1, w + 2, cin), lambda i, t: (i, t * th + th, 0, 0)),
            pl.BlockSpec((1, 1, w + 2, cin), lambda i, t: (i, t * th + th + 1, 0, 0)),
            pl.BlockSpec((9, cin, cout), lambda i, t: (0, 0, 0)),
            pl.BlockSpec((1, cout), lambda i, t: (0, 0)),
        ],
        out_specs=pl.BlockSpec((1, cout, th * w), lambda i, t: (i, 0, t)),
        compiler_params=pltpu.CompilerParams(
            dimension_semantics=("parallel", "parallel"),
            vmem_limit_bytes=_VMEM_LIMIT),
    )(xp, xp, xp, w_flat, b2)
    return out.reshape(n, cout, h, w)


def adaptive_max_pool2d(x_nchw, out_hw):
    """F.adaptive_max_pool2d for the integer-factor case. x: (N,C,H,W) -> (N,C,Ho,Wo).
    Windowing is done in-kernel on the VMEM-resident block (no HBM pre-transpose glue)."""
    n, c, h, w = x_nchw.shape
    ho, wo = out_hw
    if (ho, wo) == (h, w):
        return x_nchw                                   # identity pool (p3 case) -- fused away
    # TODO(synk): non-divisible adaptive pooling (overlapping windows) not implemented.
    assert h % ho == 0 and w % wo == 0
    fh, fw = h // ho, w // wo
    nc = n * c
    x = x_nchw.reshape(nc, h, w)
    tile_nc = _pick_leading_tile(nc, h * w * x.dtype.itemsize, _BLOCK_BYTE_BUDGET,
                                 prefer_multi=True)

    def kernel(x_ref, o_ref):
        xv = x_ref[...]                                               # (T, H, W)
        # pool along H: regroup rows (minor dim untouched) + reduce the window axis
        xv = jnp.max(xv.reshape(tile_nc, ho, fh, w), axis=2)          # (T, Ho, W)
        # pool along W: move W onto the sublane axis, same trick, then swap back
        xv = jnp.swapaxes(xv, 1, 2)                                   # (T, W, Ho)
        xv = jnp.max(xv.reshape(tile_nc, wo, fw, ho), axis=2)         # (T, Wo, Ho)
        o_ref[...] = jnp.swapaxes(xv, 1, 2)                           # (T, Ho, Wo)

    out = pl.pallas_call(
        kernel,
        out_shape=jax.ShapeDtypeStruct((nc, ho, wo), x_nchw.dtype),
        grid=(nc // tile_nc,),
        in_specs=[pl.BlockSpec((tile_nc, h, w), lambda i: (i, 0, 0))],
        out_specs=pl.BlockSpec((tile_nc, ho, wo), lambda i: (i, 0, 0)),
        compiler_params=pltpu.CompilerParams(
            dimension_semantics=("parallel",),
            vmem_limit_bytes=_VMEM_LIMIT),
    )(x)
    return out.reshape(n, c, ho, wo)


class CRMaskPallas:
    """Pallas version of the CRMask-specific forward computation."""

    def __init__(self, in_channels, key):
        # detectron2-style cfg defaults, deterministic parameter init
        self.pixel_mean = jnp.array([103.530, 116.280, 123.675], jnp.float32)
        self.pixel_std = jnp.array([1.0, 1.0, 1.0], jnp.float32)
        self.gc = True                      # cfg.MODEL.CRMASK.SVD.GLOBAL_CONTEXT
        self.gc_in_feature = "p3"
        self.gc_out_channels = 32
        # One-line toggle: jnp.bfloat16 halves the HBM-bound conv's activation traffic on
        # v6e/v7x (loosen the self-check tolerances if enabled); f32 keeps checks tight here.
        self.conv_dtype = jnp.float32
        k1, k2 = jax.random.split(key)
        fan_in = in_channels * 9
        self.gc_weight = (jax.random.normal(
            k1, (self.gc_out_channels, in_channels, 3, 3), jnp.float32)
            * (2.0 / fan_in) ** 0.5)
        self.gc_bias = jax.random.normal(k2, (self.gc_out_channels,), jnp.float32) * 0.01

    def forward(self, images_nchw, features):
        images_norm = normalize_images(images_nchw, self.pixel_mean, self.pixel_std)
        # TODO(synk): backbone / proposal_generator / crmask_head / mask_branch are entire
        # registry-built sub-networks with no standalone Pallas equivalent; the FPN `features`
        # dict is taken as an input instead of being produced by a backbone.
        if self.gc:
            gc_feature = conv3x3_same(features[self.gc_in_feature],
                                      self.gc_weight, self.gc_bias,
                                      compute_dtype=self.conv_dtype)   # (N, 32, H3, W3) NCHW
            # cascade pooling: each level is pooled from the previous (larger) pooled level,
            # so the full-resolution gc feature is only read once (exact for nested windows).
            order = sorted(features.keys(),
                           key=lambda k: -(features[k].shape[-2] * features[k].shape[-1]))
            pooled = {}
            prev = gc_feature
            for name in order:
                hh, ww = features[name].shape[-2:]
                prev = adaptive_max_pool2d(prev, (hh, ww))
                pooled[name] = prev
            features = {name: jnp.concatenate((v, pooled[name]), axis=1)
                        for name, v in features.items()}
        return images_norm, features


# ----------------------------- reference (pure JAX) ------------------------

def _conv_ref(x, w, b):
    y = jax.lax.conv_general_dilated(
        x, w, window_strides=(1, 1), padding="SAME",
        dimension_numbers=("NCHW", "OIHW", "NCHW"))
    return y + b[None, :, None, None]


def _pool_ref(x, out_hw):
    n, c, h, w = x.shape
    ho, wo = out_hw
    fh, fw = h // ho, w // wo
    return jnp.max(x.reshape(n, c, ho, fh, wo, fw), axis=(3, 5))


# ----------------------------- main ----------------------------------------

if __name__ == "__main__":
    key = jax.random.PRNGKey(0)
    k_img, k_p3, k_p4, k_p5, k_param = jax.random.split(key, 5)

    N, CIN = 2, 4
    images = jax.random.uniform(k_img, (N, 3, 32, 32), jnp.float32) * 255.0
    features = {
        "p3": jax.random.normal(k_p3, (N, CIN, 16, 16), jnp.float32),
        "p4": jax.random.normal(k_p4, (N, CIN, 8, 8), jnp.float32),
        "p5": jax.random.normal(k_p5, (N, CIN, 4, 4), jnp.float32),
    }

    model = CRMaskPallas(in_channels=CIN, key=k_param)
    images_norm, out_features = model.forward(images, features)

    images_norm = jax.block_until_ready(images_norm)
    out_features = jax.tree_util.tree_map(jax.block_until_ready, out_features)

    # ---- correctness checks against pure-JAX references ----
    norm_ref = (images - model.pixel_mean[None, :, None, None]) / \
        model.pixel_std[None, :, None, None]
    assert jnp.allclose(images_norm, norm_ref, atol=1e-4, rtol=1e-4)

    gc_ref = _conv_ref(features["p3"], model.gc_weight, model.gc_bias)
    for name, v in features.items():
        H, W = v.shape[-2:]
        ref_cat = jnp.concatenate((v, _pool_ref(gc_ref, (H, W))), axis=1)
        assert out_features[name].shape == (N, CIN + model.gc_out_channels, H, W)
        assert jnp.allclose(out_features[name], ref_cat, atol=1e-3, rtol=1e-3)

    print("KERNEL_OK")
</pallas_src>

<mosaic_0001>
module attributes {stable_mosaic.version = 11 : i64} {
  func.func @_normalize_kernel(%arg0: i32, %arg1: i32, %arg2: memref<3x1xf32, #tpu.memory_space<vmem>>, %arg3: memref<3x1xf32, #tpu.memory_space<vmem>>, %arg4: memref<1x3x1024xf32, #tpu.memory_space<vmem>>, %arg5: memref<1x3x1024xf32, #tpu.memory_space<vmem>>) attributes {dimension_semantics = [#tpu.dimension_semantics<parallel>, #tpu.dimension_semantics<parallel>], iteration_bounds = array<i64: 2, 1>, scalar_prefetch = 0 : i64, scratch_operands = 0 : i64, tpu.core_type = #tpu.core_type<tc>, window_params = [{pipeline_mode = #tpu.pipeline_mode<synchronous>, transform_indices = @transform_0, window_bounds = array<i64: 3, 1>}, {pipeline_mode = #tpu.pipeline_mode<synchronous>, transform_indices = @transform_1, window_bounds = array<i64: 3, 1>}, {transform_indices = @transform_2, window_bounds = array<i64: 1, 3, 1024>}, {transform_indices = @transform_3, window_bounds = array<i64: 1, 3, 1024>}]} {
    %c0 = arith.constant 0 : index
    %c0_0 = arith.constant 0 : index
    %c0_1 = arith.constant 0 : index
    %0 = vector.load %arg4[%c0, %c0_0, %c0_1] : memref<1x3x1024xf32, #tpu.memory_space<vmem>>, vector<1x3x1024xf32>
    %1 = vector.shape_cast %0 : vector<1x3x1024xf32> to vector<3x1024xf32>
    %c0_2 = arith.constant 0 : index
    %c0_3 = arith.constant 0 : index
    %2 = vector.load %arg2[%c0_2, %c0_3] : memref<3x1xf32, #tpu.memory_space<vmem>>, vector<3x1xf32>
    %3 = vector.broadcast %2 : vector<3x1xf32> to vector<3x1024xf32>
    %4 = arith.mulf %1, %3 : vector<3x1024xf32>
    %c0_4 = arith.constant 0 : index
    %c0_5 = arith.constant 0 : index
    %5 = vector.load %arg3[%c0_4, %c0_5] : memref<3x1xf32, #tpu.memory_space<vmem>>, vector<3x1xf32>
    %6 = vector.broadcast %5 : vector<3x1xf32> to vector<3x1024xf32>
    %7 = arith.addf %4, %6 : vector<3x1024xf32>
    %c0_6 = arith.constant 0 : index
    %c0_7 = arith.constant 0 : index
    %c0_8 = arith.constant 0 : index
    %8 = vector.load %arg5[%c0_6, %c0_7, %c0_8] : memref<1x3x1024xf32, #tpu.memory_space<vmem>>, vector<1x3x1024xf32>
    %9 = vector.shape_cast %8 : vector<1x3x1024xf32> to vector<3x1024xf32>
    %10 = vector.shape_cast %7 : vector<3x1024xf32> to vector<1x3x1024xf32>
    tpu.vector_store %arg5[%c0_6, %c0_7, %c0_8], %10 {strides = array<i32>} : memref<1x3x1024xf32, #tpu.memory_space<vmem>>, vector<1x3x1024xf32>,
    return
  }
  func.func @transform_0(%arg0: i32, %arg1: i32) -> (i32, i32) {
    %c0_i32 = arith.constant 0 : i32
    %c0_i32_0 = arith.constant 0 : i32
    %c0_i32_1 = arith.constant 0 : i32
    return %c0_i32, %c0_i32_0 : i32, i32
  }
  func.func @transform_1(%arg0: i32, %arg1: i32) -> (i32, i32) {
    %c0_i32 = arith.constant 0 : i32
    %c0_i32_0 = arith.constant 0 : i32
    %c0_i32_1 = arith.constant 0 : i32
    return %c0_i32, %c0_i32_0 : i32, i32
  }
  func.func @transform_2(%arg0: i32, %arg1: i32) -> (i32, i32, i32) {
    %c0_i32 = arith.constant 0 : i32
    %c0_i32_0 = arith.constant 0 : i32
    return %arg0, %c0_i32, %arg1 : i32, i32, i32
  }
  func.func @transform_3(%arg0: i32, %arg1: i32) -> (i32, i32, i32) {
    %c0_i32 = arith.constant 0 : i32
    %c0_i32_0 = arith.constant 0 : i32
    return %arg0, %c0_i32, %arg1 : i32, i32, i32
  }
}

</mosaic_0001>

<llo_original>
// kernel: tpu_custom_call.1
$region0: #{tpu_custom_call.1}
  #allocation0 [shape = 'u32[]', space=smem, size = 0x4, offset = 0x4, fixed_abs, tag = 'smem constant byte address 0x4 - core index']
  #allocation1 [shape = 'u32[72,128]{1,0:T(1,128)}', space=vmem, size = 0x9000, scoped, tag = 'internal scratch']
  %s0 = inlined_call_operand.vmem [shape: f32[3,1], index: 0, kind: input, shape index: {}]
  %s1 = inlined_call_operand.vmem [shape: f32[3,1], index: 1, kind: input, shape index: {}]
  %s2 = inlined_call_operand.vmem [shape: f32[2,3,1024], index: 2, kind: input, shape index: {}]
  %s3 = inlined_call_operand.vmem [shape: f32[2,3,1024], index: 3, kind: output, shape index: {}]
  %s4 = sld [smem:[#allocation0]]
  $region45: #{tpu_custom_call.1} parent=0
    _
  %s6 = ssub.s32 1, %s4
  %s7 = scalar_select 0, %s6, %s4
  loop: start=0, step=1, limit=4
  $region2: #{tpu_custom_call.1} parent=0 // loop_pre_header
    _
  $region3: #{tpu_custom_call.1} parent=0 // loop_header
    %s9 = sphi 0, %s13
    %p10 = scmp.ge.s32.totalorder %s9, 4
    %s16 = sphi 0, %s28
    %s17 = sphi 0, %s24
    %s18 = sphi 0, %s16
    %s19 = sphi 0, %s17
    %s20 = sphi 0, %s18
    %s21 = sphi 0, %s19
    %s29 = sphi 0, %s29
    %s31 = sphi 0, %s29
    %s32 = sphi 0, %s31
    %s46 = sphi 0, %s32
    %s50 = sphi 0, %s50
    %s52 = sphi 0, %s50
    %s53 = sphi 0, %s52
    %s67 = sphi 0, %s53
    %s75 = sphi 0, %s77
    %s78 = sphi 0, %s75
    %s79 = sphi 0, %s78
    %s95 = sphi 0, %s79
    %s103 = sphi 0, %s105
    %s106 = sphi 0, %s103
    %s107 = sphi 0, %s106
    %s123 = sphi 0, %s107
  $region4: #{tpu_custom_call.1} parent=0 // loop_header_branch
    %12 = sbr.rel (%p10) target = $region8
  $region5: #{tpu_custom_call.1} parent=0 // loop_body
    %s14 = ssub.s32 %s9, 1
    %s15 = ssub.s32 %s9, 2
    %s22 = sadd.s32 1, %s17
    %p23 = scmp.ge.s32.totalorder %s22, 1
    %s24 = scalar_select %p23, 0, %s22
    %s25 = sadd.s32 1, %s16
    %s26 = scalar_select %p23, %s25, %s16
    %p27 = scmp.ge.s32.totalorder %s26, 2
    %s28 = scalar_select %p27, 0, %s26
    %s30 = sadd.s32 %s29, 1
    %p33 = scmp.eq.s32.totalorder %s9, 1
    %p34 = scmp.ne.s32.totalorder %s29, %s31
    %p35 = scmp.eq.s32.totalorder %s9, 0
    %p36 = por %p34, %p35
    %p37 = scmp.ne.s32.totalorder %s29, %s31
    %p38 = scmp.eq.s32.totalorder %s14, 1
    %p39 = por %p37, %p38
    %p40 = scmp.ne.s32.totalorder %s31, %s32
    %p41 = scmp.eq.s32.totalorder %s14, 0
    %p42 = por %p40, %p41
    %p43 = scmp.ne.s32.totalorder %s31, %s32
    %p44 = scmp.eq.s32.totalorder %s15, 1
    %p45 = por %p43, %p44
    %p47 = scmp.ne.s32.totalorder %s32, %s46
    %p48 = scmp.eq.s32.totalorder %s15, 0
    %p49 = por %p47, %p48
    %s51 = sadd.s32 %s50, 1
    %p54 = scmp.eq.s32.totalorder %s9, 1
    %p55 = scmp.ne.s32.totalorder %s50, %s52
    %p56 = scmp.eq.s32.totalorder %s9, 0
    %p57 = por %p55, %p56
    %p58 = scmp.ne.s32.totalorder %s50, %s52
    %p59 = scmp.eq.s32.totalorder %s14, 1
    %p60 = por %p58, %p59
    %p61 = scmp.ne.s32.totalorder %s52, %s53
    %p62 = scmp.eq.s32.totalorder %s14, 0
    %p63 = por %p61, %p62
    %p64 = scmp.ne.s32.totalorder %s52, %s53
    %p65 = scmp.eq.s32.totalorder %s15, 1
    %p66 = por %p64, %p65
    %p68 = scmp.ne.s32.totalorder %s53, %s67
    %p69 = scmp.eq.s32.totalorder %s15, 0
    %p70 = por %p68, %p69
    %s71 = ssub.s32 %s16, %s28
    %s72 = ssub.s32 %s17, %s24
    %s73 = sor.u32 %s71, %s72
    %p74 = scmp.eq.s32.totalorder %s73, 0
    %s76 = sadd.s32 %s75, 1
    %s77 = scalar_select %p74, %s75, %s76
    %p80 = pneg %p74
    %p81 = scmp.eq.s32.totalorder %s9, 1
    %p82 = por %p80, %p81
    %p83 = scmp.ne.s32.totalorder %s75, %s78
    %p84 = scmp.eq.s32.totalorder %s9, 0
    %p85 = por %p83, %p84
    %p86 = scmp.ne.s32.totalorder %s75, %s78
    %p87 = scmp.eq.s32.totalorder %s14, 1
    %p88 = por %p86, %p87
    %p89 = scmp.ne.s32.totalorder %s78, %s79
    %p90 = scmp.eq.s32.totalorder %s14, 0
    %p91 = por %p89, %p90
    %p92 = scmp.ne.s32.totalorder %s78, %s79
    %p93 = scmp.eq.s32.totalorder %s15, 1
    %p94 = por %p92, %p93
    %p96 = scmp.ne.s32.totalorder %s79, %s95
    %p97 = scmp.eq.s32.totalorder %s15, 0
    %p98 = por %p96, %p97
    %s99 = ssub.s32 %s16, %s28
    %s100 = ssub.s32 %s17, %s24
    %s101 = sor.u32 %s99, %s100
    %p102 = scmp.eq.s32.totalorder %s101, 0
    %s104 = sadd.s32 %s103, 1
    %s105 = scalar_select %p102, %s103, %s104
    %p108 = pneg %p102
    %p109 = scmp.eq.s32.totalorder %s9, 1
    %p110 = por %p108, %p109
    %p111 = scmp.ne.s32.totalorder %s103, %s106
    %p112 = scmp.eq.s32.totalorder %s9, 0
    %p113 = por %p111, %p112
    %p114 = scmp.ne.s32.totalorder %s103, %s106
    %p115 = scmp.eq.s32.totalorder %s14, 1
    %p116 = por %p114, %p115
    %p117 = scmp.ne.s32.totalorder %s106, %s107
    %p118 = scmp.eq.s32.totalorder %s14, 0
    %p119 = por %p117, %p118
    %p120 = scmp.ne.s32.totalorder %s106, %s107
    %p121 = scmp.eq.s32.totalorder %s15, 1
    %p122 = por %p120, %p121
    %p124 = scmp.ne.s32.totalorder %s107, %s123
    %p125 = scmp.eq.s32.totalorder %s15, 0
    %p126 = por %p124, %p125
    %p127 = scmp.le.s32.totalorder 1, %s9
    %p128 = scmp.lt.s32.totalorder %s9, 3
    %p129 = pnand %p127, %p128
    %p130 = pneg %p129
    // Predicated region
    $region9: #{tpu_custom_call.1} parent=5 // pred_check
      _
    $region10: #{tpu_custom_call.1} parent=5 // pred_check_branch
      %132 = sbr.rel (%p129) target = $region12
    $region11: #{tpu_custom_call.1} parent=5 // pred_region
      %s133 = ssub.s32 %s9, 1
      // Predicated region
      $region13: #{tpu_custom_call.1} parent=11 // pred_check
        %p134 = pneg %p42
      $region14: #{tpu_custom_call.1} parent=11 // pred_check_branch
        %136 = sbr.rel (%p134) target = $region16
      $region15: #{tpu_custom_call.1} parent=11 // pred_region
        _
      $region16: #{tpu_custom_call.1} parent=11 // pred_fallthru
        _
      // Predicated region
      $region17: #{tpu_custom_call.1} parent=11 // pred_check
        %p137 = pneg %p63
      $region18: #{tpu_custom_call.1} parent=11 // pred_check_branch
        %139 = sbr.rel (%p137) target = $region20
      $region19: #{tpu_custom_call.1} parent=11 // pred_region
        _
      $region20: #{tpu_custom_call.1} parent=11 // pred_fallthru
        _
    $region12: #{tpu_custom_call.1} parent=5 // pred_fallthru
      _
    %p140 = scmp.lt.s32.totalorder %s9, 2
    // Predicated region
    $region21: #{tpu_custom_call.1} parent=5 // pred_check
      %p141 = pneg %p140
    $region22: #{tpu_custom_call.1} parent=5 // pred_check_branch
      %143 = sbr.rel (%p141) target = $region24
    $region23: #{tpu_custom_call.1} parent=5 // pred_region
      // Predicated region
      $region25: #{tpu_custom_call.1} parent=23 // pred_check
        %p144 = pneg %p85
      $region26: #{tpu_custom_call.1} parent=23 // pred_check_branch
        %146 = sbr.rel (%p144) target = $region28
      $region27: #{tpu_custom_call.1} parent=23 // pred_region
        %s147 = smul.u32 8, %s17
        %p148 = scmp.lt.s32.totalorder %s16, 1
        %s149 = scalar_select %p148, %s16, 1
        %p150 = scmp.lt.s32.totalorder %s147, 7
        %s151 = scalar_select %p150, %s147, 7
        %s152 = smul.addr %s149, 8
        %s153 = sadd.s32 %s151, %s152
        %s154 = smul.addr %s153, 4
        %s155 = scalar_lea.vmem %s2, %s154
        %s156 = smul.u32 8, %s17
      $region28: #{tpu_custom_call.1} parent=23 // pred_fallthru
        _
    $region24: #{tpu_custom_call.1} parent=5 // pred_fallthru
      _
    %p157 = scmp.le.s32.totalorder 1, %s9
    %p158 = scmp.lt.s32.totalorder %s9, 3
    %p159 = pnand %p157, %p158
    %p160 = pneg %p159
    // Predicated region
    $region29: #{tpu_custom_call.1} parent=5 // pred_check
      _
    $region30: #{tpu_custom_call.1} parent=5 // pred_check_branch
      %162 = sbr.rel (%p159) target = $region32
    $region31: #{tpu_custom_call.1} parent=5 // pred_region
      %s163 = ssub.s32 %s9, 1
      %p164 = pneg %p42
      %p165 = pneg %p39
      %p166 = pneg %p63
      %p167 = pneg %p60
      %s168 = smul.u32 8, %s19
      %p169 = scmp.lt.s32.totalorder %s18, 1
      %s170 = scalar_select %p169, %s18, 1
      %p171 = scmp.lt.s32.totalorder %s168, 7
      %s172 = scalar_select %p171, %s168, 7
      %s173 = smul.addr %s170, 8
      %s174 = sadd.s32 %s172, %s173
      %s175 = smul.addr %s174, 4
      %s176 = scalar_lea.vmem %s2, %s175
      %p177 = pneg %p91
      %p178 = pneg %p88
      %p179 = pneg %p119
      %p180 = pneg %p116
      %s181 = smul.u32 8, %s19
      %p182 = scmp.lt.s32.totalorder %s18, 1
      %s183 = scalar_select %p182, %s18, 1
      %p184 = scmp.lt.s32.totalorder %s181, 7
      %s185 = scalar_select %p184, %s181, 7
      %s186 = smul.addr %s183, 8
      %s187 = sadd.s32 %s185, %s186
      %s188 = smul.addr %s187, 4
      %s189 = scalar_lea.vmem %s3, %s188
      %s190 = smul.u32 8, %s19
      %p191 = scmp.lt.s32.totalorder %s18, 1
      %s192 = scalar_select %p191, %s18, 1
      %p193 = scmp.lt.s32.totalorder %s190, 7
      %s194 = scalar_select %p193, %s190, 7
      %s195 = smul.addr %s192, 8
      %s196 = sadd.s32 %s194, %s195
      %s197 = smul.addr %s196, 4
      %s198 = scalar_lea.vmem %s2, %s197
      %s199 = smul.u32 8, %s19
      %s200 = smul.u32 8, %s19
      %p201 = scmp.lt.s32.totalorder %s18, 1
      %s202 = scalar_select %p201, %s18, 1
      %p203 = scmp.lt.s32.totalorder %s200, 7
      %s204 = scalar_select %p203, %s200, 7
      %s205 = smul.addr %s202, 8
      %s206 = sadd.s32 %s204, %s205
      %s207 = smul.addr %s206, 4
      %s208 = scalar_lea.vmem %s3, %s207
      %s209 = smul.u32 8, %s19
      %v210 = vld [vmem:[%s198] sm:$0x77]
      %v211 = vld [vmem:[%s198 + $0x8] sm:$0x77]
      %v212 = vld [vmem:[%s198 + $0x10] sm:$0x77]
      %v213 = vld [vmem:[%s198 + $0x18] sm:$0x77]
      %v214 = vld [vmem:[%s0] sm:$0x7]
      %216 = vset.pattern.permute.xlu0 0
      %217 = vperm.xlu0 %216, %v214
      %v218 = vpop.permute.xlu0 %217
      %v220 = vunpack.c.l.s4 839922192
      %v221 = vunpack.c.0.s8 %v220
      %v222 = vperm.slane %v218, %v221
      %v224 = vmul.f32 %v210, %v222
      %v225 = vmul.f32 %v211, %v222
      %v226 = vmul.f32 %v212, %v222
      %v227 = vmul.f32 %v213, %v222
      %v228 = vld [vmem:[%s1] sm:$0x7]
      %230 = vset.pattern.permute.xlu0 0
      %231 = vperm.xlu0 %230, %v228
      %v232 = vpop.permute.xlu0 %231
      %v234 = vunpack.c.l.s4 839922192
      %v235 = vunpack.c.0.s8 %v234
      %v236 = vperm.slane %v232, %v235
      %v238 = vadd.f32 %v224, %v236
      %v239 = vadd.f32 %v225, %v236
      %v240 = vadd.f32 %v226, %v236
      %v241 = vadd.f32 %v227, %v236
      %242 = vst [vmem:[%s208] sm:$0x77] %v238
      %243 = vst [vmem:[%s208 + $0x8] sm:$0x77] %v239
      %244 = vst [vmem:[%s208 + $0x10] sm:$0x77] %v240
      %245 = vst [vmem:[%s208 + $0x18] sm:$0x77] %v241
      %s246 = smul.u32 8, %s19
      %p247 = scmp.lt.s32.totalorder %s18, 1
      %s248 = scalar_select %p247, %s18, 1
      %p249 = scmp.lt.s32.totalorder %s246, 7
      %s250 = scalar_select %p249, %s246, 7
      %s251 = smul.addr %s248, 8
      %s252 = sadd.s32 %s250, %s251
      %s253 = smul.addr %s252, 4
      %s254 = scalar_lea.vmem %s3, %s253
      // Predicated region
      $region33: #{tpu_custom_call.1} parent=31 // pred_check
        %p255 = pneg %p116
      $region34: #{tpu_custom_call.1} parent=31 // pred_check_branch
        %257 = sbr.rel (%p255) target = $region36
      $region35: #{tpu_custom_call.1} parent=31 // pred_region
        %s258 = smul.u32 8, %s19
      $region36: #{tpu_custom_call.1} parent=31 // pred_fallthru
        _
    $region32: #{tpu_custom_call.1} parent=5 // pred_fallthru
      _
    %p259 = scmp.le.s32.totalorder 2, %s9
    // Predicated region
    $region37: #{tpu_custom_call.1} parent=5 // pred_check
      %p260 = pneg %p259
    $region38: #{tpu_custom_call.1} parent=5 // pred_check_branch
      %262 = sbr.rel (%p260) target = $region40
    $region39: #{tpu_custom_call.1} parent=5 // pred_region
      %s263 = ssub.s32 %s9, 2
      // Predicated region
      $region41: #{tpu_custom_call.1} parent=39 // pred_check
        %p264 = pneg %p122
      $region42: #{tpu_custom_call.1} parent=39 // pred_check_branch
        %266 = sbr.rel (%p264) target = $region44
      $region43: #{tpu_custom_call.1} parent=39 // pred_region
        %s267 = smul.u32 8, %s21
        %p268 = scmp.lt.s32.totalorder %s20, 1
        %s269 = scalar_select %p268, %s20, 1
        %p270 = scmp.lt.s32.totalorder %s267, 7
        %s271 = scalar_select %p270, %s267, 7
        %s272 = smul.addr %s269, 8
        %s273 = sadd.s32 %s271, %s272
        %s274 = smul.addr %s273, 4
        %s275 = scalar_lea.vmem %s3, %s274
      $region44: #{tpu_custom_call.1} parent=39 // pred_fallthru
        _
    $region40: #{tpu_custom_call.1} parent=5 // pred_fallthru
      _
  $region6: #{tpu_custom_call.1} parent=0 // loop_footer
    %s13 = sadd.s32 1, %s9
  $region7: #{tpu_custom_call.1} parent=0 // loop_footer_branch
    %8 = sbr.rel target = $region3
  $region8: #{tpu_custom_call.1} parent=0 // loop_exit
    _

</llo_original>
